<compile_context>
chip_gen: v7x
topology: tpu7x:2x2x1
jax: 0.10.0
libtpu: 0.0.40
codegen_flags: <defaults>
</compile_context>

<pallas_src>
import functools

import jax
import jax.numpy as jnp
import numpy as np
from jax import lax
from jax.experimental import pallas as pl
from jax.experimental.pallas import tpu as pltpu

# Quantization tables from models/quant_module.py
hwgq_steps = {1: 0.799, 2: 0.538, 3: 0.3217, 4: 0.185, 5: 0.185, 6: 0.185,
              7: 0.185, 8: 0.185}
gaussian_steps = {0: 2.0, 1: 1.596, 2: 0.996, 3: 0.586, 4: 0.335, 5: 0.188,
                  6: 0.104, 7: 0.057, 8: 0.031, 15: 1 / 8, 16: 1 / 8}


def _round_up(x, m):
    return ((x + m - 1) // m) * m


def _tpu_params():
    """Returns (is_v7, has_int_mxu, vmem_capacity_bytes); robust to query failures."""
    kind = ""
    try:
        kind = jax.devices()[0].device_kind.lower()
    except Exception:
        pass
    is_v7 = ("v7" in kind) or ("tpu7" in kind.replace(" ", ""))
    # Integer MXU exists on v4/v5/v6; v7x dropped it.  Unknown chips -> safe bf16 path.
    has_int_mxu = (not is_v7) and any(t in kind for t in ("v4", "v5", "v6"))
    try:
        vmem_cap = int(pltpu.get_tpu_info().vmem_capacity_bytes)
    except Exception:
        vmem_cap = (64 if is_v7 else 128) * 1024 * 1024
    return is_v7, has_int_mxu, vmem_cap


# ---------------------------------------------------------------------------
# Kernel: plain tiled matmul of pre-quantized codes.  Grid = (M, N, K) with the
# reduction (K) axis last; the output block is revisited across K, so it acts as
# the accumulator (no scratch).  Combined dequantization scale (SMEM scalar) is
# applied in place on the last K step.
# ---------------------------------------------------------------------------
def _quant_matmul_kernel(scale_ref, a_ref, w_ref, o_ref, *, int_mxu):
    kk = pl.program_id(2)

    if int_mxu:
        prod = jnp.dot(a_ref[...], w_ref[...],
                       preferred_element_type=jnp.int32).astype(jnp.float32)
    else:
        prod = jnp.dot(a_ref[...], w_ref[...],
                       preferred_element_type=jnp.float32)

    @pl.when(kk == 0)
    def _():
        o_ref[...] = prod

    @pl.when(kk > 0)
    def _():
        o_ref[...] = o_ref[...] + prod

    @pl.when(kk == pl.num_programs(2) - 1)
    def _():
        o_ref[...] = o_ref[...] * scale_ref[0]


def _im2col_nhwc(x, kh, kw, stride, padding, dilation):
    """NHWC input -> (M, K) patches with K ordered (C, kh, kw) to match OIHW weights."""
    n, h, w, c = x.shape
    xp = jnp.pad(x, ((0, 0), (padding, padding), (padding, padding), (0, 0)))
    hp, wp = h + 2 * padding, w + 2 * padding
    ho = (hp - dilation * (kh - 1) - 1) // stride + 1
    wo = (wp - dilation * (kw - 1) - 1) // stride + 1
    rows = []
    for i in range(kh):
        cols = []
        for j in range(kw):
            sl = xp[:, i * dilation: i * dilation + (ho - 1) * stride + 1: stride,
                       j * dilation: j * dilation + (wo - 1) * stride + 1: stride, :]
            cols.append(sl)                           # (N, Ho, Wo, C)
        rows.append(jnp.stack(cols, axis=-1))         # (N, Ho, Wo, C, kw)
    patches = jnp.stack(rows, axis=-2)                # (N, Ho, Wo, C, kh, kw)
    return patches.reshape(n * ho * wo, c * kh * kw), ho, wo


def quant_activ_conv2d(x_nchw, weight_oihw, *, abit, wbit,
                       stride=1, padding=0, dilation=1, groups=1,
                       out_layout="NCHW"):
    """Forward pass of QuantActivConv2d: HWGQ(abit) activ -> gauss-quant(wbit) conv2d."""
    assert groups == 1  # TODO(synk): grouped / depthwise convolution not implemented.
    assert wbit > 0
    n, c, h, w = x_nchw.shape
    o, ci, kh, kw = weight_oihw.shape
    assert ci == c

    is_v7, has_int_mxu, vmem_cap = _tpu_params()

    # ---- 1) HWGQ activation quantization -> integer codes, done in the wrapper on
    #         the un-amplified N*H*W*C tensor (before im2col). ----
    x_f = x_nchw.astype(jnp.float32)
    if abit < 32:
        act_step = float(hwgq_steps[abit])
        act_clip = act_step * float(2 ** abit - 1)
        a_vals = jnp.round(jnp.clip(x_f, 0.0, act_clip) / act_step)   # codes 0..2^abit-1
        a_scale = jnp.float32(act_step)
        a_is_codes = True
    else:
        a_vals = jnp.maximum(x_f, 0.0)               # plain ReLU; keep f32 (lossless)
        a_scale = jnp.float32(1.0)
        a_is_codes = False

    # ---- 2) Gaussian weight quantization (needs a global std -> hoisted, one tiny op). ----
    w_f = weight_oihw.astype(jnp.float32)
    if wbit < 32:
        gstep = gaussian_steps[wbit] * jnp.std(w_f, ddof=1)          # torch std is unbiased
        lvls = 2.0 ** wbit / 2.0
        w_codes = jnp.clip(jnp.round(w_f / gstep + 0.5) - 0.5,
                           -(lvls - 0.5), lvls - 0.5)                # half-integer codes
        if wbit <= 8:
            w_vals, w_scale, w_is_codes = w_codes, gstep.astype(jnp.float32), True
        else:                                        # wbit in {15,16}: not bf16-exact
            w_vals, w_scale, w_is_codes = w_codes * gstep, jnp.float32(1.0), False
    else:
        w_vals, w_scale, w_is_codes = w_f, jnp.float32(1.0), False

    # ---- 3) MXU operand dtype selection. ----
    use_int8 = (a_is_codes and w_is_codes and abit <= 7 and wbit <= 7 and has_int_mxu)
    if use_int8:
        # codes <= 127 and 2*half-integer codes (odd ints, |.| <= 127) are exact int8;
        # the folded 1/2 goes into the output scale.  ~2x MXU rate on v5e/v6e, exact acc.
        a_op = a_vals.astype(jnp.int8)
        w_op = (w_vals * 2.0).astype(jnp.int8)
        scale = a_scale * w_scale * jnp.float32(0.5)
    elif a_is_codes and w_is_codes:
        # codes <= 255 / half-integers <= 127.5 are exact in bf16 -> fast bf16 MXU path.
        a_op = a_vals.astype(jnp.bfloat16)
        w_op = w_vals.astype(jnp.bfloat16)
        scale = a_scale * w_scale
    else:
        # abit >= 32 or wbit > 8: operands are not exact codes; keep f32 so the result
        # is not degraded by a lossy bf16 cast (slower f32 matmul path).
        a_op = a_vals
        w_op = w_vals.astype(jnp.float32)
        scale = a_scale * w_scale
    scale_arr = jnp.asarray(scale, jnp.float32).reshape(1)

    # ---- 4) im2col on the *quantized* (1-2 byte) codes; K ordered (C,kh,kw) = OIHW. ----
    # TODO(synk): replace with in-kernel strided NHWC window reads (manual DMA) to remove
    # the kH*kW HBM read amplification for bandwidth-bound layers.
    x_nhwc = jnp.transpose(a_op, (0, 2, 3, 1))
    patches, ho, wo = _im2col_nhwc(x_nhwc, kh, kw, stride, padding, dilation)
    m, k = patches.shape
    w_ko = w_op.reshape(o, k).T                                      # (K, O)

    a_itemsize = jnp.dtype(a_op.dtype).itemsize
    w_itemsize = jnp.dtype(w_op.dtype).itemsize

    # ---- 5) Per-generation tiling (lane-dense O, weight-resident K when it fits). ----
    tm_target = 256 if is_v7 else 512            # 128 MiB VMEM on v5e/v6e -> bigger tiles
    tm = tm_target if m >= tm_target else _round_up(m, 32)
    m_pad = _round_up(m, tm)

    tn_cap = 1024 if is_v7 else 2048             # bound per-step VMEM under v7x's 64 MiB
    o_pad = _round_up(o, 128)
    if o_pad > tn_cap:
        tn = tn_cap
        o_pad = _round_up(o_pad, tn)
    else:
        tn = o_pad

    k_pad_full = _round_up(k, 128)
    weight_budget = vmem_cap // 4                # ~32 MiB (v5e/v6e), ~16 MiB (v7x)
    work_budget = int(0.55 * vmem_cap)

    def _vmem_need(tk_):
        # double-buffered A + W tiles, output tile (+ writeback buffer)
        return (2 * tm * tk_ * a_itemsize + 2 * tk_ * tn * w_itemsize
                + 2 * tm * tn * 4)

    if (k_pad_full * tn * w_itemsize <= weight_budget
            and _vmem_need(k_pad_full) <= work_budget):
        tk = k_pad_full          # single K step: weight block index constant -> DMA'd once
    else:
        tk = min(512 if is_v7 else 1024, k_pad_full)
    k_pad = _round_up(k, tk)

    if (m_pad, k_pad) != (m, k):
        patches = jnp.pad(patches, ((0, m_pad - m), (0, k_pad - k)))
    if (k_pad, o_pad) != (k, o):
        w_ko = jnp.pad(w_ko, ((0, k_pad - k), (0, o_pad - o)))

    vmem_need = _vmem_need(tk)
    vmem_limit = int(min(0.65 * vmem_cap, max(2.0 * vmem_need, 32 * 1024 * 1024)))

    kernel = functools.partial(_quant_matmul_kernel, int_mxu=use_int8)

    out = pl.pallas_call(
        kernel,
        out_shape=jax.ShapeDtypeStruct((m_pad, o_pad), jnp.float32),
        grid_spec=pltpu.PrefetchScalarGridSpec(
            num_scalar_prefetch=0,
            grid=(m_pad // tm, o_pad // tn, k_pad // tk),
            in_specs=[
                pl.BlockSpec(memory_space=pltpu.MemorySpace.SMEM),   # dequant scale
                pl.BlockSpec((tm, tk), lambda i, j, kk: (i, kk)),    # activation codes
                pl.BlockSpec((tk, tn), lambda i, j, kk: (kk, j)),    # weight codes
            ],
            out_specs=pl.BlockSpec((tm, tn), lambda i, j, kk: (i, j)),
        ),
        compiler_params=pltpu.CompilerParams(
            dimension_semantics=("parallel", "parallel", "arbitrary"),
            vmem_limit_bytes=vmem_limit),
    )(scale_arr, patches, w_ko)

    out = out[:m, :o].reshape(n, ho, wo, o)
    if out_layout == "NHWC":                     # NHWC consumers can skip the transpose
        return out
    return jnp.transpose(out, (0, 3, 1, 2))      # back to NCHW (module layout)


def _reference(x_nchw, weight, abit, wbit, stride, padding, dilation):
    """Pure-JAX f32 mirror of the PyTorch QuantActivConv2d forward (for verification)."""
    if abit < 32:
        step = hwgq_steps[abit]
        clip_thr = float(step * (2 ** abit - 1))
        y = jnp.clip(x_nchw, 0.0, clip_thr)
        xq = jnp.round(y / step) * step
    else:
        xq = jnp.maximum(x_nchw, 0.0)

    if wbit < 32:
        step_w = gaussian_steps[wbit] * jnp.std(weight, ddof=1)
        lvls = 2.0 ** wbit / 2.0
        wq = (jnp.round(weight / step_w + 0.5) - 0.5) * step_w
        thr = (lvls - 0.5) * step_w
        wq = jnp.clip(wq, -thr, thr)
    else:
        wq = weight

    return lax.conv_general_dilated(
        xq, wq,
        window_strides=(stride, stride),
        padding=[(padding, padding), (padding, padding)],
        rhs_dilation=(dilation, dilation),
        dimension_numbers=("NCHW", "OIHW", "NCHW"),
        precision=lax.Precision.HIGHEST,
    )


if __name__ == "__main__":
    key = jax.random.PRNGKey(0)
    k_x, k_w = jax.random.split(key)

    # Small shapes consistent with the module: QuantActivConv2d(4, 8, kernel_size=3,
    # stride=1, padding=1, bias=False), abit=2 / wbit=2.
    N, Cin, H, W = 2, 4, 16, 16
    Cout, kH, kW = 8, 3, 3
    abit, wbit = 2, 2
    stride, padding, dilation = 1, 1, 1

    x = jax.random.normal(k_x, (N, Cin, H, W), jnp.float32) * 2.0
    weight = jax.random.normal(k_w, (Cout, Cin, kH, kW), jnp.float32) * 0.5

    out = quant_activ_conv2d(x, weight, abit=abit, wbit=wbit,
                             stride=stride, padding=padding, dilation=dilation)
    out = jax.block_until_ready(out)
    assert out.shape == (N, Cout, H, W)

    ref = _reference(x, weight, abit, wbit, stride, padding, dilation)
    np.testing.assert_allclose(np.asarray(out), np.asarray(ref), rtol=1e-3, atol=1e-3)

    print("KERNEL_OK")
</pallas_src>

<mosaic_0001>
module attributes {stable_mosaic.version = 11 : i64} {
  func.func @_quant_matmul_kernel(%arg0: i32, %arg1: i32, %arg2: i32, %arg3: memref<1xf32, #tpu.memory_space<smem>>, %arg4: memref<512x128xbf16, #tpu.memory_space<vmem>>, %arg5: memref<128x128xbf16, #tpu.memory_space<vmem>>, %arg6: memref<512x128xf32, #tpu.memory_space<vmem>>) attributes {dimension_semantics = [#tpu.dimension_semantics<parallel>, #tpu.dimension_semantics<parallel>, #tpu.dimension_semantics<arbitrary>], iteration_bounds = array<i64: 1, 1, 1>, scalar_prefetch = 0 : i64, scratch_operands = 0 : i64, tpu.core_type = #tpu.core_type<tc>, window_params = [{transform_indices = @transform_0, window_bounds = array<i64: 1>}, {transform_indices = @transform_1, window_bounds = array<i64: 512, 128>}, {transform_indices = @transform_2, window_bounds = array<i64: 128, 128>}, {transform_indices = @transform_3, window_bounds = array<i64: 512, 128>}]} {
    %c0 = arith.constant 0 : index
    %c0_0 = arith.constant 0 : index
    %0 = vector.load %arg4[%c0, %c0_0] : memref<512x128xbf16, #tpu.memory_space<vmem>>, vector<512x128xbf16>
    %c0_1 = arith.constant 0 : index
    %c0_2 = arith.constant 0 : index
    %1 = vector.load %arg5[%c0_1, %c0_2] : memref<128x128xbf16, #tpu.memory_space<vmem>>, vector<128x128xbf16>
    %cst = arith.constant dense<0.000000e+00> : vector<512x128xf32>
    %2 = tpu.matmul %0, %1, %cst {dimension_numbers = #tpu.dot_dimension_numbers<[1], [0], [0], [1], [0, 0, 1, 1], [], []>} : vector<512x128xbf16>, vector<128x128xbf16>, vector<512x128xf32> -> vector<512x128xf32>
    %c0_i32 = arith.constant 0 : i32
    %3 = arith.cmpi eq, %arg2, %c0_i32 : i32
    %4 = arith.extui %3 : i1 to i32
    %c0_i32_3 = arith.constant 0 : i32
    %5 = arith.cmpi ne, %4, %c0_i32_3 : i32
    scf.if %5 {
      %c0_8 = arith.constant 0 : index
      %c0_9 = arith.constant 0 : index
      %12 = vector.load %arg6[%c0_8, %c0_9] : memref<512x128xf32, #tpu.memory_space<vmem>>, vector<512x128xf32>
      tpu.vector_store %arg6[%c0_8, %c0_9], %2 {strides = array<i32>} : memref<512x128xf32, #tpu.memory_space<vmem>>, vector<512x128xf32>,
    } else {
    }
    %c0_i32_4 = arith.constant 0 : i32
    %6 = arith.cmpi sgt, %arg2, %c0_i32_4 : i32
    %7 = arith.extui %6 : i1 to i32
    %c0_i32_5 = arith.constant 0 : i32
    %8 = arith.cmpi ne, %7, %c0_i32_5 : i32
    scf.if %8 {
      %c0_8 = arith.constant 0 : index
      %c0_9 = arith.constant 0 : index
      %12 = vector.load %arg6[%c0_8, %c0_9] : memref<512x128xf32, #tpu.memory_space<vmem>>, vector<512x128xf32>
      %13 = arith.addf %12, %2 : vector<512x128xf32>
      %c0_10 = arith.constant 0 : index
      %c0_11 = arith.constant 0 : index
      %14 = vector.load %arg6[%c0_10, %c0_11] : memref<512x128xf32, #tpu.memory_space<vmem>>, vector<512x128xf32>
      tpu.vector_store %arg6[%c0_10, %c0_11], %13 {strides = array<i32>} : memref<512x128xf32, #tpu.memory_space<vmem>>, vector<512x128xf32>,
    } else {
    }
    %c0_i32_6 = arith.constant 0 : i32
    %9 = arith.cmpi eq, %arg2, %c0_i32_6 : i32
    %10 = arith.extui %9 : i1 to i32
    %c0_i32_7 = arith.constant 0 : i32
    %11 = arith.cmpi ne, %10, %c0_i32_7 : i32
    scf.if %11 {
      %c0_8 = arith.constant 0 : index
      %c0_9 = arith.constant 0 : index
      %12 = vector.load %arg6[%c0_8, %c0_9] : memref<512x128xf32, #tpu.memory_space<vmem>>, vector<512x128xf32>
      %c0_10 = arith.constant 0 : index
      %13 = memref.load %arg3[%c0_10] : memref<1xf32, #tpu.memory_space<smem>>
      %14 = vector.broadcast %13 : f32 to vector<512x128xf32>
      %15 = arith.mulf %12, %14 : vector<512x128xf32>
      %c0_11 = arith.constant 0 : index
      %c0_12 = arith.constant 0 : index
      %16 = vector.load %arg6[%c0_11, %c0_12] : memref<512x128xf32, #tpu.memory_space<vmem>>, vector<512x128xf32>
      tpu.vector_store %arg6[%c0_11, %c0_12], %15 {strides = array<i32>} : memref<512x128xf32, #tpu.memory_space<vmem>>, vector<512x128xf32>,
    } else {
    }
    return
  }
  func.func @transform_0(%arg0: i32, %arg1: i32, %arg2: i32) -> i32 {
    %c0_i32 = arith.constant 0 : i32
    %c0_i32_0 = arith.constant 0 : i32
    return %c0_i32 : i32
  }
  func.func @transform_1(%arg0: i32, %arg1: i32, %arg2: i32) -> (i32, i32) {
    %c0_i32 = arith.constant 0 : i32
    return %arg0, %arg2 : i32, i32
  }
  func.func @transform_2(%arg0: i32, %arg1: i32, %arg2: i32) -> (i32, i32) {
    %c0_i32 = arith.constant 0 : i32
    return %arg2, %arg1 : i32, i32
  }
  func.func @transform_3(%arg0: i32, %arg1: i32, %arg2: i32) -> (i32, i32) {
    %c0_i32 = arith.constant 0 : i32
    return %arg0, %arg1 : i32, i32
  }
}

</mosaic_0001>

<llo_original>
// kernel: tpu_custom_call.1
$region0: #{tpu_custom_call.1}
  #allocation0 [shape = 'u32[]', space=smem, size = 0x4, offset = 0x4, fixed_abs, tag = 'smem constant byte address 0x4 - core index']
  #allocation1 [shape = 'u32[144,128]{1,0:T(1,128)}', space=vmem, size = 0x12000, scoped, tag = 'internal scratch']
  #allocation2 [shape = 'f32[1]{0:T(128)S(6)}', space=smem, size = 0x200, scoped, tag = 'scoped memory for tpu_custom_call.1']
  %s0 = inlined_call_operand.<no memory space> [shape: f32[1], index: 0, kind: input, shape index: {}]
  %s1 = inlined_call_operand.hbm [shape: bf16[512,128], index: 1, kind: input, shape index: {}]
  %s2 = inlined_call_operand.hbm [shape: bf16[128,128], index: 2, kind: input, shape index: {}]
  %s3 = inlined_call_operand.hbm [shape: f32[512,128], index: 3, kind: output, shape index: {}]
  %s4 = sld [smem:[#allocation0]]
  $region42: #{tpu_custom_call.1} parent=0
    _
  %s6 = ssub.s32 1, %s4
  %s7 = scalar_select 0, %s6, %s4
  %8 = sst [smem:[#allocation2]] %s0
  $region1: #{tpu_custom_call.1} parent=0
    #allocation3 [shape = 'u8[131072]{0}', space=vmem, size = 0x20000, scoped, tag = 'input window, operand 1, single buffered']
    #allocation4 [shape = 's32[1]{0}', space=sflag, size = 0x4, scoped, tag = 'scoped memory for tpu_custom_call.1']
    #allocation5 [shape = 's32[1]{0}', space=sflag, size = 0x4, scoped, tag = 'scoped memory for tpu_custom_call.1']
    #allocation6 [shape = 'u8[32768]{0}', space=vmem, size = 0x8000, scoped, tag = 'input window, operand 2, single buffered']
    #allocation7 [shape = 's32[1]{0}', space=sflag, size = 0x4, scoped, tag = 'scoped memory for tpu_custom_call.1']
    #allocation8 [shape = 'u8[262144]{0}', space=vmem, size = 0x40000, scoped, tag = 'output window, operand 0, single buffered']
    %9 = vsyncpa [#allocation4], 0
    %10 = vsyncpa [#allocation7], 0
    %11 = vsyncpa [#allocation5], 0
    // Predicated region
    $region2: #{tpu_custom_call.1} parent=1 // pred_check
      _
    $region3: #{tpu_custom_call.1} parent=1 // pred_check_branch
      %13 = sbr.rel (0) target = $region5
    $region4: #{tpu_custom_call.1} parent=1 // pred_region
      _
    $region5: #{tpu_custom_call.1} parent=1 // pred_fallthru
      _
    // Predicated region
    $region6: #{tpu_custom_call.1} parent=1 // pred_check
      _
    $region7: #{tpu_custom_call.1} parent=1 // pred_check_branch
      %15 = sbr.rel (0) target = $region9
    $region8: #{tpu_custom_call.1} parent=1 // pred_region
      %s17 = ssub.s32 4096, 4096
      %18 = vsyncadd [#allocation4], %s17
      %s19 = sshll.u32 [#allocation3], 4
      %s20 = int_to_ptr.vmem [resolvable:$true] %s19
      %25 = dma.hbm_to_vmem [thread:$0]  %s1, 4096, %s20, [#allocation4], 64, 64, 4
    $region9: #{tpu_custom_call.1} parent=1 // pred_fallthru
      _
    // Predicated region
    $region10: #{tpu_custom_call.1} parent=1 // pred_check
      _
    $region11: #{tpu_custom_call.1} parent=1 // pred_check_branch
      %27 = sbr.rel (0) target = $region13
    $region12: #{tpu_custom_call.1} parent=1 // pred_region
      %s29 = ssub.s32 1024, 1024
      %30 = vsyncadd [#allocation7], %s29
      %s31 = sshll.u32 [#allocation6], 4
      %s32 = int_to_ptr.vmem [resolvable:$true] %s31
      %37 = dma.hbm_to_vmem [thread:$0]  %s2, 1024, %s32, [#allocation7], 64, 64, 4
    $region13: #{tpu_custom_call.1} parent=1 // pred_fallthru
      _
    // Predicated region
    $region14: #{tpu_custom_call.1} parent=1 // pred_check
      _
    $region15: #{tpu_custom_call.1} parent=1 // pred_check_branch
      %39 = sbr.rel (0) target = $region17
    $region16: #{tpu_custom_call.1} parent=1 // pred_region
      %40 = dma.done [#allocation4], 4096
    $region17: #{tpu_custom_call.1} parent=1 // pred_fallthru
      _
    // Predicated region
    $region18: #{tpu_custom_call.1} parent=1 // pred_check
      _
    $region19: #{tpu_custom_call.1} parent=1 // pred_check_branch
      %42 = sbr.rel (0) target = $region21
    $region20: #{tpu_custom_call.1} parent=1 // pred_region
      %43 = dma.done [#allocation7], 1024
    $region21: #{tpu_custom_call.1} parent=1 // pred_fallthru
      _
    %v45 = vld [vmem:[#allocation3] sm:$0xf]
    %v46 = vld [vmem:[#allocation3 + $0x4] sm:$0xf]
    %v47 = vld [vmem:[#allocation3 + $0x8] sm:$0xf]
    %v48 = vld [vmem:[#allocation3 + $0xc] sm:$0xf]
    %v49 = vld [vmem:[#allocation3 + $0x10] sm:$0xf]
    %v50 = vld [vmem:[#allocation3 + $0x14] sm:$0xf]
    %v51 = vld [vmem:[#allocation3 + $0x18] sm:$0xf]
    %v52 = vld [vmem:[#allocation3 + $0x1c] sm:$0xf]
    %v53 = vld [vmem:[#allocation3 + $0x20] sm:$0xf]
    %v54 = vld [vmem:[#allocation3 + $0x24] sm:$0xf]
    %v55 = vld [vmem:[#allocation3 + $0x28] sm:$0xf]
    %v56 = vld [vmem:[#allocation3 + $0x2c] sm:$0xf]
    %v57 = vld [vmem:[#allocation3 + $0x30] sm:$0xf]
    %v58 = vld [vmem:[#allocation3 + $0x34] sm:$0xf]
    %v59 = vld [vmem:[#allocation3 + $0x38] sm:$0xf]
    %v60 = vld [vmem:[#allocation3 + $0x3c] sm:$0xf]
    %v61 = vld [vmem:[#allocation3 + $0x40] sm:$0xf]
    %v62 = vld [vmem:[#allocation3 + $0x44] sm:$0xf]
    %v63 = vld [vmem:[#allocation3 + $0x48] sm:$0xf]
    %v64 = vld [vmem:[#allocation3 + $0x4c] sm:$0xf]
    %v65 = vld [vmem:[#allocation3 + $0x50] sm:$0xf]
    %v66 = vld [vmem:[#allocation3 + $0x54] sm:$0xf]
    %v67 = vld [vmem:[#allocation3 + $0x58] sm:$0xf]
    %v68 = vld [vmem:[#allocation3 + $0x5c] sm:$0xf]
    %v69 = vld [vmem:[#allocation3 + $0x60] sm:$0xf]
    %v70 = vld [vmem:[#allocation3 + $0x64] sm:$0xf]
    %v71 = vld [vmem:[#allocation3 + $0x68] sm:$0xf]
    %v72 = vld [vmem:[#allocation3 + $0x6c] sm:$0xf]
    %v73 = vld [vmem:[#allocation3 + $0x70] sm:$0xf]
    %v74 = vld [vmem:[#allocation3 + $0x74] sm:$0xf]
    %v75 = vld [vmem:[#allocation3 + $0x78] sm:$0xf]
    %v76 = vld [vmem:[#allocation3 + $0x7c] sm:$0xf]
    %v77 = vld [vmem:[#allocation3 + $0x80] sm:$0xf]
    %v78 = vld [vmem:[#allocation3 + $0x84] sm:$0xf]
    %v79 = vld [vmem:[#allocation3 + $0x88] sm:$0xf]
    %v80 = vld [vmem:[#allocation3 + $0x8c] sm:$0xf]
    %v81 = vld [vmem:[#allocation3 + $0x90] sm:$0xf]
    %v82 = vld [vmem:[#allocation3 + $0x94] sm:$0xf]
    %v83 = vld [vmem:[#allocation3 + $0x98] sm:$0xf]
    %v84 = vld [vmem:[#allocation3 + $0x9c] sm:$0xf]
    %v85 = vld [vmem:[#allocation3 + $0xa0] sm:$0xf]
    %v86 = vld [vmem:[#allocation3 + $0xa4] sm:$0xf]
    %v87 = vld [vmem:[#allocation3 + $0xa8] sm:$0xf]
    %v88 = vld [vmem:[#allocation3 + $0xac] sm:$0xf]
    %v89 = vld [vmem:[#allocation3 + $0xb0] sm:$0xf]
    %v90 = vld [vmem:[#allocation3 + $0xb4] sm:$0xf]
    %v91 = vld [vmem:[#allocation3 + $0xb8] sm:$0xf]
    %v92 = vld [vmem:[#allocation3 + $0xbc] sm:$0xf]
    %v93 = vld [vmem:[#allocation3 + $0xc0] sm:$0xf]
    %v94 = vld [vmem:[#allocation3 + $0xc4] sm:$0xf]
    %v95 = vld [vmem:[#allocation3 + $0xc8] sm:$0xf]
    %v96 = vld [vmem:[#allocation3 + $0xcc] sm:$0xf]
    %v97 = vld [vmem:[#allocation3 + $0xd0] sm:$0xf]
    %v98 = vld [vmem:[#allocation3 + $0xd4] sm:$0xf]
    %v99 = vld [vmem:[#allocation3 + $0xd8] sm:$0xf]
    %v100 = vld [vmem:[#allocation3 + $0xdc] sm:$0xf]
    %v101 = vld [vmem:[#allocation3 + $0xe0] sm:$0xf]
    %v102 = vld [vmem:[#allocation3 + $0xe4] sm:$0xf]
    %v103 = vld [vmem:[#allocation3 + $0xe8] sm:$0xf]
    %v104 = vld [vmem:[#allocation3 + $0xec] sm:$0xf]
    %v105 = vld [vmem:[#allocation3 + $0xf0] sm:$0xf]
    %v106 = vld [vmem:[#allocation3 + $0xf4] sm:$0xf]
    %v107 = vld [vmem:[#allocation3 + $0xf8] sm:$0xf]
    %v108 = vld [vmem:[#allocation3 + $0xfc] sm:$0xf]
    %v109 = vld [vmem:[#allocation6] sm:$0xf]
    %v110 = vld [vmem:[#allocation6 + $0x4] sm:$0xf]
    %v111 = vld [vmem:[#allocation6 + $0x8] sm:$0xf]
    %v112 = vld [vmem:[#allocation6 + $0xc] sm:$0xf]
    %v113 = vld [vmem:[#allocation6 + $0x10] sm:$0xf]
    %v114 = vld [vmem:[#allocation6 + $0x14] sm:$0xf]
    %v115 = vld [vmem:[#allocation6 + $0x18] sm:$0xf]
    %v116 = vld [vmem:[#allocation6 + $0x1c] sm:$0xf]
    %v117 = vld [vmem:[#allocation6 + $0x20] sm:$0xf]
    %v118 = vld [vmem:[#allocation6 + $0x24] sm:$0xf]
    %v119 = vld [vmem:[#allocation6 + $0x28] sm:$0xf]
    %v120 = vld [vmem:[#allocation6 + $0x2c] sm:$0xf]
    %v121 = vld [vmem:[#allocation6 + $0x30] sm:$0xf]
    %v122 = vld [vmem:[#allocation6 + $0x34] sm:$0xf]
    %v123 = vld [vmem:[#allocation6 + $0x38] sm:$0xf]
    %v124 = vld [vmem:[#allocation6 + $0x3c] sm:$0xf]
    %v189 = vunpack.c.l.b16 %v45
    %v190 = vunpack.c.l.b16 %v46
    %v191 = vunpack.c.l.b16 %v47
    %v192 = vunpack.c.l.b16 %v48
    %v193 = vunpack.c.l.b16 %v49
    %v194 = vunpack.c.l.b16 %v50
    %v195 = vunpack.c.l.b16 %v51
    %v196 = vunpack.c.l.b16 %v52
    %v197 = vunpack.c.l.b16 %v53
    %v198 = vunpack.c.l.b16 %v54
    %v199 = vunpack.c.l.b16 %v55
    %v200 = vunpack.c.l.b16 %v56
    %v201 = vunpack.c.l.b16 %v57
    %v202 = vunpack.c.l.b16 %v58
    %v203 = vunpack.c.l.b16 %v59
    %v204 = vunpack.c.l.b16 %v60
    %v205 = vunpack.c.l.b16 %v61
    %v206 = vunpack.c.l.b16 %v62
    %v207 = vunpack.c.l.b16 %v63
    %v208 = vunpack.c.l.b16 %v64
    %v209 = vunpack.c.l.b16 %v65
    %v210 = vunpack.c.l.b16 %v66
    %v211 = vunpack.c.l.b16 %v67
    %v212 = vunpack.c.l.b16 %v68
    %v213 = vunpack.c.l.b16 %v69
    %v214 = vunpack.c.l.b16 %v70
    %v215 = vunpack.c.l.b16 %v71
    %v216 = vunpack.c.l.b16 %v72
    %v217 = vunpack.c.l.b16 %v73
    %v218 = vunpack.c.l.b16 %v74
    %v219 = vunpack.c.l.b16 %v75
    %v220 = vunpack.c.l.b16 %v76
    %v221 = vunpack.c.l.b16 %v77
    %v222 = vunpack.c.l.b16 %v78
    %v223 = vunpack.c.l.b16 %v79
    %v224 = vunpack.c.l.b16 %v80
    %v225 = vunpack.c.l.b16 %v81
    %v226 = vunpack.c.l.b16 %v82
    %v227 = vunpack.c.l.b16 %v83
    %v228 = vunpack.c.l.b16 %v84
    %v229 = vunpack.c.l.b16 %v85
    %v230 = vunpack.c.l.b16 %v86
    %v231 = vunpack.c.l.b16 %v87
    %v232 = vunpack.c.l.b16 %v88
    %v233 = vunpack.c.l.b16 %v89
    %v234 = vunpack.c.l.b16 %v90
    %v235 = vunpack.c.l.b16 %v91
    %v236 = vunpack.c.l.b16 %v92
    %v237 = vunpack.c.l.b16 %v93
    %v238 = vunpack.c.l.b16 %v94
    %v239 = vunpack.c.l.b16 %v95
    %v240 = vunpack.c.l.b16 %v96
    %v241 = vunpack.c.l.b16 %v97
    %v242 = vunpack.c.l.b16 %v98
    %v243 = vunpack.c.l.b16 %v99
    %v244 = vunpack.c.l.b16 %v100
    %v245 = vunpack.c.l.b16 %v101
    %v246 = vunpack.c.l.b16 %v102
    %v247 = vunpack.c.l.b16 %v103
    %v248 = vunpack.c.l.b16 %v104
    %v249 = vunpack.c.l.b16 %v105
    %v250 = vunpack.c.l.b16 %v106
    %v251 = vunpack.c.l.b16 %v107
    %v252 = vunpack.c.l.b16 %v108
    %v253 = vpack.c.b16 %v190, %v189
    %v254 = vpack.c.b16 %v192, %v191
    %v255 = vpack.c.b16 %v194, %v193
    %v256 = vpack.c.b16 %v196, %v195
    %v257 = vpack.c.b16 %v198, %v197
    %v258 = vpack.c.b16 %v200, %v199
    %v259 = vpack.c.b16 %v202, %v201
    %v260 = vpack.c.b16 %v204, %v203
    %v261 = vpack.c.b16 %v206, %v205
    %v262 = vpack.c.b16 %v208, %v207
    %v263 = vpack.c.b16 %v210, %v209
    %v264 = vpack.c.b16 %v212, %v211
    %v265 = vpack.c.b16 %v214, %v213
    %v266 = vpack.c.b16 %v216, %v215
    %v267 = vpack.c.b16 %v218, %v217
    %v268 = vpack.c.b16 %v220, %v219
    %v269 = vpack.c.b16 %v222, %v221
    %v270 = vpack.c.b16 %v224, %v223
    %v271 = vpack.c.b16 %v226, %v225
    %v272 = vpack.c.b16 %v228, %v227
    %v273 = vpack.c.b16 %v230, %v229
    %v274 = vpack.c.b16 %v232, %v231
    %v275 = vpack.c.b16 %v234, %v233
    %v276 = vpack.c.b16 %v236, %v235
    %v277 = vpack.c.b16 %v238, %v237
    %v278 = vpack.c.b16 %v240, %v239
    %v279 = vpack.c.b16 %v242, %v241
    %v280 = vpack.c.b16 %v244, %v243
    %v281 = vpack.c.b16 %v246, %v245
    %v282 = vpack.c.b16 %v248, %v247
    %v283 = vpack.c.b16 %v250, %v249
    %v284 = vpack.c.b16 %v252, %v251
    %v333 = vunpack.c.l.b16 %v109
    %v334 = vunpack.c.l.b16 %v110
    %v335 = vunpack.c.l.b16 %v111
    %v336 = vunpack.c.l.b16 %v112
    %v337 = vunpack.c.l.b16 %v113
    %v338 = vunpack.c.l.b16 %v114
    %v339 = vunpack.c.l.b16 %v115
    %v340 = vunpack.c.l.b16 %v116
    %v341 = vunpack.c.l.b16 %v117
    %v342 = vunpack.c.l.b16 %v118
    %v343 = vunpack.c.l.b16 %v119
    %v344 = vunpack.c.l.b16 %v120
    %v345 = vunpack.c.l.b16 %v121
    %v346 = vunpack.c.l.b16 %v122
    %v347 = vunpack.c.l.b16 %v123
    %v348 = vunpack.c.l.b16 %v124
    %v349 = vpack.c.b16 %v334, %v333
    %v350 = vpack.c.b16 %v336, %v335
    %v351 = vpack.c.b16 %v338, %v337
    %v352 = vpack.c.b16 %v340, %v339
    %v353 = vpack.c.b16 %v342, %v341
    %v354 = vpack.c.b16 %v344, %v343
    %v355 = vpack.c.b16 %v346, %v345
    %v356 = vpack.c.b16 %v348, %v347
    %365 = vmatprep.subr.bf16.mxu0 0
    %366 = vmatpush1.bf16.msra.mxu0 %v349
    %367 = vmatprep.subr.bf16.mxu0 0
    %368 = vmatpush1.bf16.msra.mxu0 %v350
    %369 = vmatprep.subr.bf16.mxu0 0
    %370 = vmatpush1.bf16.msra.mxu0 %v351
    %371 = vmatprep.subr.bf16.mxu0 0
    %372 = vmatpush1.bf16.msra.mxu0 %v352
    %373 = vmatprep.subr.bf16.mxu0 0
    %374 = vmatpush1.bf16.msra.mxu0 %v353
    %375 = vmatprep.subr.bf16.mxu0 0
    %376 = vmatpush1.bf16.msra.mxu0 %v354
    %377 = vmatprep.subr.bf16.mxu0 0
    %378 = vmatpush1.bf16.msra.mxu0 %v355
    %379 = vmatprep.subr.bf16.mxu0 0
    %380 = vmatpush1.bf16.msra.mxu0 %v356
    %381 = vmatprep.subr.bf16.mxu0 0
    %382 = vmatpush1.bf16.msra.mxu0 0
    %383 = vmatprep.subr.bf16.mxu0 0
    %384 = vmatpush1.bf16.msra.mxu0 0
    %385 = vmatprep.subr.bf16.mxu0 0
    %386 = vmatpush1.bf16.msra.mxu0 0
    %387 = vmatprep.subr.bf16.mxu0 0
    %388 = vmatpush1.bf16.msra.mxu0 0
    %389 = vmatprep.subr.bf16.mxu0 0
    %390 = vmatpush1.bf16.msra.mxu0 0
    %391 = vmatprep.subr.bf16.mxu0 0
    %392 = vmatpush1.bf16.msra.mxu0 0
    %393 = vmatprep.subr.bf16.mxu0 0
    %394 = vmatpush1.bf16.msra.mxu0 0
    %395 = vmatprep.subr.bf16.mxu0 0
    %396 = vmatpush1.bf16.msra.mxu0 0
    %397 = vmatprep.mubr.bf16.mxu0 0
    %398 = vmatmul.mubr.bf16.gmra.mrb[0].mxu0 %v253
    %v399 = vpop.f32.mrb[0].mxu0
    %v400 = vadd.f32 0.0, %v399
    %v401 = vpop.f32.mrb[0].mxu0
    %v402 = vpop.f32.mrb[0].mxu0
    %v403 = vadd.f32 0.0, %v402
    %v404 = vpop.f32.mrb[0].mxu0
    %405 = vmatprep.mubr.bf16.mxu0 0
    %406 = vmatmul.mubr.bf16.gmra.mrb[0].mxu0 %v254
    %v407 = vpop.f32.mrb[0].mxu0
    %v408 = vadd.f32 0.0, %v407
    %v409 = vpop.f32.mrb[0].mxu0
    %v410 = vpop.f32.mrb[0].mxu0
    %v411 = vadd.f32 0.0, %v410
    %v412 = vpop.f32.mrb[0].mxu0
    %413 = vmatprep.mubr.bf16.mxu0 0
    %414 = vmatmul.mubr.bf16.gmra.mrb[0].mxu0 %v255
    %v415 = vpop.f32.mrb[0].mxu0
    %v416 = vadd.f32 0.0, %v415
    %v417 = vpop.f32.mrb[0].mxu0
    %v418 = vpop.f32.mrb[0].mxu0
    %v419 = vadd.f32 0.0, %v418
    %v420 = vpop.f32.mrb[0].mxu0
    %421 = vmatprep.mubr.bf16.mxu0 0
    %422 = vmatmul.mubr.bf16.gmra.mrb[0].mxu0 %v256
    %v423 = vpop.f32.mrb[0].mxu0
    %v424 = vadd.f32 0.0, %v423
    %v425 = vpop.f32.mrb[0].mxu0
    %v426 = vpop.f32.mrb[0].mxu0
    %v427 = vadd.f32 0.0, %v426
    %v428 = vpop.f32.mrb[0].mxu0
    %429 = vmatprep.mubr.bf16.mxu0 0
    %430 = vmatmul.mubr.bf16.gmra.mrb[0].mxu0 %v257
    %v431 = vpop.f32.mrb[0].mxu0
    %v432 = vadd.f32 0.0, %v431
    %v433 = vpop.f32.mrb[0].mxu0
    %v434 = vpop.f32.mrb[0].mxu0
    %v435 = vadd.f32 0.0, %v434
    %v436 = vpop.f32.mrb[0].mxu0
    %437 = vmatprep.mubr.bf16.mxu0 0
    %438 = vmatmul.mubr.bf16.gmra.mrb[0].mxu0 %v258
    %v439 = vpop.f32.mrb[0].mxu0
    %v440 = vadd.f32 0.0, %v439
    %v441 = vpop.f32.mrb[0].mxu0
    %v442 = vpop.f32.mrb[0].mxu0
    %v443 = vadd.f32 0.0, %v442
    %v444 = vpop.f32.mrb[0].mxu0
    %445 = vmatprep.mubr.bf16.mxu0 0
    %446 = vmatmul.mubr.bf16.gmra.mrb[0].mxu0 %v259
    %v447 = vpop.f32.mrb[0].mxu0
    %v448 = vadd.f32 0.0, %v447
    %v449 = vpop.f32.mrb[0].mxu0
    %v450 = vpop.f32.mrb[0].mxu0
    %v451 = vadd.f32 0.0, %v450
    %v452 = vpop.f32.mrb[0].mxu0
    %453 = vmatprep.mubr.bf16.mxu0 0
    %454 = vmatmul.mubr.bf16.gmra.mrb[0].mxu0 %v260
    %v455 = vpop.f32.mrb[0].mxu0
    %v456 = vadd.f32 0.0, %v455
    %v457 = vpop.f32.mrb[0].mxu0
    %v458 = vpop.f32.mrb[0].mxu0
    %v459 = vadd.f32 0.0, %v458
    %v460 = vpop.f32.mrb[0].mxu0
    %461 = vmatprep.mubr.bf16.mxu0 0
    %462 = vmatmul.mubr.bf16.gmra.mrb[0].mxu0 %v261
    %v463 = vpop.f32.mrb[0].mxu0
    %v464 = vadd.f32 0.0, %v463
    %v465 = vpop.f32.mrb[0].mxu0
    %v466 = vpop.f32.mrb[0].mxu0
    %v467 = vadd.f32 0.0, %v466
    %v468 = vpop.f32.mrb[0].mxu0
    %469 = vmatprep.mubr.bf16.mxu0 0
    %470 = vmatmul.mubr.bf16.gmra.mrb[0].mxu0 %v262
    %v471 = vpop.f32.mrb[0].mxu0
    %v472 = vadd.f32 0.0, %v471
    %v473 = vpop.f32.mrb[0].mxu0
    %v474 = vpop.f32.mrb[0].mxu0
    %v475 = vadd.f32 0.0, %v474
    %v476 = vpop.f32.mrb[0].mxu0
    %477 = vmatprep.mubr.bf16.mxu0 0
    %478 = vmatmul.mubr.bf16.gmra.mrb[0].mxu0 %v263
    %v479 = vpop.f32.mrb[0].mxu0
    %v480 = vadd.f32 0.0, %v479
    %v481 = vpop.f32.mrb[0].mxu0
    %v482 = vpop.f32.mrb[0].mxu0
    %v483 = vadd.f32 0.0, %v482
    %v484 = vpop.f32.mrb[0].mxu0
    %485 = vmatprep.mubr.bf16.mxu0 0
    %486 = vmatmul.mubr.bf16.gmra.mrb[0].mxu0 %v264
    %v487 = vpop.f32.mrb[0].mxu0
    %v488 = vadd.f32 0.0, %v487
    %v489 = vpop.f32.mrb[0].mxu0
    %v490 = vpop.f32.mrb[0].mxu0
    %v491 = vadd.f32 0.0, %v490
    %v492 = vpop.f32.mrb[0].mxu0
    %493 = vmatprep.mubr.bf16.mxu0 0
    %494 = vmatmul.mubr.bf16.gmra.mrb[0].mxu0 %v265
    %v495 = vpop.f32.mrb[0].mxu0
    %v496 = vadd.f32 0.0, %v495
    %v497 = vpop.f32.mrb[0].mxu0
    %v498 = vpop.f32.mrb[0].mxu0
    %v499 = vadd.f32 0.0, %v498
    %v500 = vpop.f32.mrb[0].mxu0
    %501 = vmatprep.mubr.bf16.mxu0 0
    %502 = vmatmul.mubr.bf16.gmra.mrb[0].mxu0 %v266
    %v503 = vpop.f32.mrb[0].mxu0
    %v504 = vadd.f32 0.0, %v503
    %v505 = vpop.f32.mrb[0].mxu0
    %v506 = vpop.f32.mrb[0].mxu0
    %v507 = vadd.f32 0.0, %v506
    %v508 = vpop.f32.mrb[0].mxu0
    %509 = vmatprep.mubr.bf16.mxu0 0
    %510 = vmatmul.mubr.bf16.gmra.mrb[0].mxu0 %v267
    %v511 = vpop.f32.mrb[0].mxu0
    %v512 = vadd.f32 0.0, %v511
    %v513 = vpop.f32.mrb[0].mxu0
    %v514 = vpop.f32.mrb[0].mxu0
    %v515 = vadd.f32 0.0, %v514
    %v516 = vpop.f32.mrb[0].mxu0
    %517 = vmatprep.mubr.bf16.mxu0 0
    %518 = vmatmul.mubr.bf16.gmra.mrb[0].mxu0 %v268
    %v519 = vpop.f32.mrb[0].mxu0
    %v520 = vadd.f32 0.0, %v519
    %v521 = vpop.f32.mrb[0].mxu0
    %v522 = vpop.f32.mrb[0].mxu0
    %v523 = vadd.f32 0.0, %v522
    %v524 = vpop.f32.mrb[0].mxu0
    %525 = vmatprep.mubr.bf16.mxu0 0
    %526 = vmatmul.mubr.bf16.gmra.mrb[0].mxu0 %v269
    %v527 = vpop.f32.mrb[0].mxu0
    %v528 = vadd.f32 0.0, %v527
    %v529 = vpop.f32.mrb[0].mxu0
    %v530 = vpop.f32.mrb[0].mxu0
    %v531 = vadd.f32 0.0, %v530
    %v532 = vpop.f32.mrb[0].mxu0
    %533 = vmatprep.mubr.bf16.mxu0 0
    %534 = vmatmul.mubr.bf16.gmra.mrb[0].mxu0 %v270
    %v535 = vpop.f32.mrb[0].mxu0
    %v536 = vadd.f32 0.0, %v535
    %v537 = vpop.f32.mrb[0].mxu0
    %v538 = vpop.f32.mrb[0].mxu0
    %v539 = vadd.f32 0.0, %v538
    %v540 = vpop.f32.mrb[0].mxu0
    %541 = vmatprep.mubr.bf16.mxu0 0
    %542 = vmatmul.mubr.bf16.gmra.mrb[0].mxu0 %v271
    %v543 = vpop.f32.mrb[0].mxu0
    %v544 = vadd.f32 0.0, %v543
    %v545 = vpop.f32.mrb[0].mxu0
    %v546 = vpop.f32.mrb[0].mxu0
    %v547 = vadd.f32 0.0, %v546
    %v548 = vpop.f32.mrb[0].mxu0
    %549 = vmatprep.mubr.bf16.mxu0 0
    %550 = vmatmul.mubr.bf16.gmra.mrb[0].mxu0 %v272
    %v551 = vpop.f32.mrb[0].mxu0
    %v552 = vadd.f32 0.0, %v551
    %v553 = vpop.f32.mrb[0].mxu0
    %v554 = vpop.f32.mrb[0].mxu0
    %v555 = vadd.f32 0.0, %v554
    %v556 = vpop.f32.mrb[0].mxu0
    %557 = vmatprep.mubr.bf16.mxu0 0
    %558 = vmatmul.mubr.bf16.gmra.mrb[0].mxu0 %v273
    %v559 = vpop.f32.mrb[0].mxu0
    %v560 = vadd.f32 0.0, %v559
    %v561 = vpop.f32.mrb[0].mxu0
    %v562 = vpop.f32.mrb[0].mxu0
    %v563 = vadd.f32 0.0, %v562
    %v564 = vpop.f32.mrb[0].mxu0
    %565 = vmatprep.mubr.bf16.mxu0 0
    %566 = vmatmul.mubr.bf16.gmra.mrb[0].mxu0 %v274
    %v567 = vpop.f32.mrb[0].mxu0
    %v568 = vadd.f32 0.0, %v567
    %v569 = vpop.f32.mrb[0].mxu0
    %v570 = vpop.f32.mrb[0].mxu0
    %v571 = vadd.f32 0.0, %v570
    %v572 = vpop.f32.mrb[0].mxu0
    %573 = vmatprep.mubr.bf16.mxu0 0
    %574 = vmatmul.mubr.bf16.gmra.mrb[0].mxu0 %v275
    %v575 = vpop.f32.mrb[0].mxu0
    %v576 = vadd.f32 0.0, %v575
    %v577 = vpop.f32.mrb[0].mxu0
    %v578 = vpop.f32.mrb[0].mxu0
    %v579 = vadd.f32 0.0, %v578
    %v580 = vpop.f32.mrb[0].mxu0
    %581 = vmatprep.mubr.bf16.mxu0 0
    %582 = vmatmul.mubr.bf16.gmra.mrb[0].mxu0 %v276
    %v583 = vpop.f32.mrb[0].mxu0
    %v584 = vadd.f32 0.0, %v583
    %v585 = vpop.f32.mrb[0].mxu0
    %v586 = vpop.f32.mrb[0].mxu0
    %v587 = vadd.f32 0.0, %v586
    %v588 = vpop.f32.mrb[0].mxu0
    %589 = vmatprep.mubr.bf16.mxu0 0
    %590 = vmatmul.mubr.bf16.gmra.mrb[0].mxu0 %v277
    %v591 = vpop.f32.mrb[0].mxu0
    %v592 = vadd.f32 0.0, %v591
    %v593 = vpop.f32.mrb[0].mxu0
    %v594 = vpop.f32.mrb[0].mxu0
    %v595 = vadd.f32 0.0, %v594
    %v596 = vpop.f32.mrb[0].mxu0
    %597 = vmatprep.mubr.bf16.mxu0 0
    %598 = vmatmul.mubr.bf16.gmra.mrb[0].mxu0 %v278
    %v599 = vpop.f32.mrb[0].mxu0
    %v600 = vadd.f32 0.0, %v599
    %v601 = vpop.f32.mrb[0].mxu0
    %v602 = vpop.f32.mrb[0].mxu0
    %v603 = vadd.f32 0.0, %v602
    %v604 = vpop.f32.mrb[0].mxu0
    %605 = vmatprep.mubr.bf16.mxu0 0
    %606 = vmatmul.mubr.bf16.gmra.mrb[0].mxu0 %v279
    %v607 = vpop.f32.mrb[0].mxu0
    %v608 = vadd.f32 0.0, %v607
    %v609 = vpop.f32.mrb[0].mxu0
    %v610 = vpop.f32.mrb[0].mxu0
    %v611 = vadd.f32 0.0, %v610
    %v612 = vpop.f32.mrb[0].mxu0
    %613 = vmatprep.mubr.bf16.mxu0 0
    %614 = vmatmul.mubr.bf16.gmra.mrb[0].mxu0 %v280
    %v615 = vpop.f32.mrb[0].mxu0
    %v616 = vadd.f32 0.0, %v615
    %v617 = vpop.f32.mrb[0].mxu0
    %v618 = vpop.f32.mrb[0].mxu0
    %v619 = vadd.f32 0.0, %v618
    %v620 = vpop.f32.mrb[0].mxu0
    %621 = vmatprep.mubr.bf16.mxu0 0
    %622 = vmatmul.mubr.bf16.gmra.mrb[0].mxu0 %v281
    %v623 = vpop.f32.mrb[0].mxu0
    %v624 = vadd.f32 0.0, %v623
    %v625 = vpop.f32.mrb[0].mxu0
    %v626 = vpop.f32.mrb[0].mxu0
    %v627 = vadd.f32 0.0, %v626
    %v628 = vpop.f32.mrb[0].mxu0
    %629 = vmatprep.mubr.bf16.mxu0 0
    %630 = vmatmul.mubr.bf16.gmra.mrb[0].mxu0 %v282
    %v631 = vpop.f32.mrb[0].mxu0
    %v632 = vadd.f32 0.0, %v631
    %v633 = vpop.f32.mrb[0].mxu0
    %v634 = vpop.f32.mrb[0].mxu0
    %v635 = vadd.f32 0.0, %v634
    %v636 = vpop.f32.mrb[0].mxu0
    %637 = vmatprep.mubr.bf16.mxu0 0
    %638 = vmatmul.mubr.bf16.gmra.mrb[0].mxu0 %v283
    %v639 = vpop.f32.mrb[0].mxu0
    %v640 = vadd.f32 0.0, %v639
    %v641 = vpop.f32.mrb[0].mxu0
    %v642 = vpop.f32.mrb[0].mxu0
    %v643 = vadd.f32 0.0, %v642
    %v644 = vpop.f32.mrb[0].mxu0
    %645 = vmatprep.mubr.bf16.mxu0 0
    %646 = vmatmul.mubr.bf16.gmra.mrb[0].mxu0 %v284
    %v647 = vpop.f32.mrb[0].mxu0
    %v648 = vadd.f32 0.0, %v647
    %v649 = vpop.f32.mrb[0].mxu0
    %v650 = vpop.f32.mrb[0].mxu0
    %v651 = vadd.f32 0.0, %v650
    %v652 = vpop.f32.mrb[0].mxu0
    %653 = vdwg.mxu0
    %p654 = scmp.eq.s32.totalorder 0, 0
    // Predicated region
    $region22: #{tpu_custom_call.1} parent=1 // pred_check
      %p655 = pneg %p654
    $region23: #{tpu_custom_call.1} parent=1 // pred_check_branch
      %657 = sbr.rel (%p655) target = $region25
    $region24: #{tpu_custom_call.1} parent=1 // pred_region
      %658 = vst [vmem:[#allocation8] sm:$0xff] %v400
      %659 = vst [vmem:[#allocation8 + $0x8] sm:$0xff] %v403
      %660 = vst [vmem:[#allocation8 + $0x10] sm:$0xff] %v408
      %661 = vst [vmem:[#allocation8 + $0x18] sm:$0xff] %v411
      %662 = vst [vmem:[#allocation8 + $0x20] sm:$0xff] %v416
      %663 = vst [vmem:[#allocation8 + $0x28] sm:$0xff] %v419
      %664 = vst [vmem:[#allocation8 + $0x30] sm:$0xff] %v424
      %665 = vst [vmem:[#allocation8 + $0x38] sm:$0xff] %v427
      %666 = vst [vmem:[#allocation8 + $0x40] sm:$0xff] %v432
      %667 = vst [vmem:[#allocation8 + $0x48] sm:$0xff] %v435
      %668 = vst [vmem:[#allocation8 + $0x50] sm:$0xff] %v440
      %669 = vst [vmem:[#allocation8 + $0x58] sm:$0xff] %v443
      %670 = vst [vmem:[#allocation8 + $0x60] sm:$0xff] %v448
      %671 = vst [vmem:[#allocation8 + $0x68] sm:$0xff] %v451
      %672 = vst [vmem:[#allocation8 + $0x70] sm:$0xff] %v456
      %673 = vst [vmem:[#allocation8 + $0x78] sm:$0xff] %v459
      %674 = vst [vmem:[#allocation8 + $0x80] sm:$0xff] %v464
      %675 = vst [vmem:[#allocation8 + $0x88] sm:$0xff] %v467
      %676 = vst [vmem:[#allocation8 + $0x90] sm:$0xff] %v472
      %677 = vst [vmem:[#allocation8 + $0x98] sm:$0xff] %v475
      %678 = vst [vmem:[#allocation8 + $0xa0] sm:$0xff] %v480
      %679 = vst [vmem:[#allocation8 + $0xa8] sm:$0xff] %v483
      %680 = vst [vmem:[#allocation8 + $0xb0] sm:$0xff] %v488
      %681 = vst [vmem:[#allocation8 + $0xb8] sm:$0xff] %v491
      %682 = vst [vmem:[#allocation8 + $0xc0] sm:$0xff] %v496
      %683 = vst [vmem:[#allocation8 + $0xc8] sm:$0xff] %v499
      %684 = vst [vmem:[#allocation8 + $0xd0] sm:$0xff] %v504
      %685 = vst [vmem:[#allocation8 + $0xd8] sm:$0xff] %v507
      %686 = vst [vmem:[#allocation8 + $0xe0] sm:$0xff] %v512
      %687 = vst [vmem:[#allocation8 + $0xe8] sm:$0xff] %v515
      %688 = vst [vmem:[#allocation8 + $0xf0] sm:$0xff] %v520
      %689 = vst [vmem:[#allocation8 + $0xf8] sm:$0xff] %v523
      %690 = vst [vmem:[#allocation8 + $0x100] sm:$0xff] %v528
      %691 = vst [vmem:[#allocation8 + $0x108] sm:$0xff] %v531
      %692 = vst [vmem:[#allocation8 + $0x110] sm:$0xff] %v536
      %693 = vst [vmem:[#allocation8 + $0x118] sm:$0xff] %v539
      %694 = vst [vmem:[#allocation8 + $0x120] sm:$0xff] %v544
      %695 = vst [vmem:[#allocation8 + $0x128] sm:$0xff] %v547
      %696 = vst [vmem:[#allocation8 + $0x130] sm:$0xff] %v552
      %697 = vst [vmem:[#allocation8 + $0x138] sm:$0xff] %v555
      %698 = vst [vmem:[#allocation8 + $0x140] sm:$0xff] %v560
      %699 = vst [vmem:[#allocation8 + $0x148] sm:$0xff] %v563
      %700 = vst [vmem:[#allocation8 + $0x150] sm:$0xff] %v568
      %701 = vst [vmem:[#allocation8 + $0x158] sm:$0xff] %v571
      %702 = vst [vmem:[#allocation8 + $0x160] sm:$0xff] %v576
      %703 = vst [vmem:[#allocation8 + $0x168] sm:$0xff] %v579
      %704 = vst [vmem:[#allocation8 + $0x170] sm:$0xff] %v584
      %705 = vst [vmem:[#allocation8 + $0x178] sm:$0xff] %v587
      %706 = vst [vmem:[#allocation8 + $0x180] sm:$0xff] %v592
      %707 = vst [vmem:[#allocation8 + $0x188] sm:$0xff] %v595
      %708 = vst [vmem:[#allocation8 + $0x190] sm:$0xff] %v600
      %709 = vst [vmem:[#allocation8 + $0x198] sm:$0xff] %v603
      %710 = vst [vmem:[#allocation8 + $0x1a0] sm:$0xff] %v608
      %711 = vst [vmem:[#allocation8 + $0x1a8] sm:$0xff] %v611
      %712 = vst [vmem:[#allocation8 + $0x1b0] sm:$0xff] %v616
      %713 = vst [vmem:[#allocation8 + $0x1b8] sm:$0xff] %v619
      %714 = vst [vmem:[#allocation8 + $0x1c0] sm:$0xff] %v624
      %715 = vst [vmem:[#allocation8 + $0x1c8] sm:$0xff] %v627
      %716 = vst [vmem:[#allocation8 + $0x1d0] sm:$0xff] %v632
      %717 = vst [vmem:[#allocation8 + $0x1d8] sm:$0xff] %v635
      %718 = vst [vmem:[#allocation8 + $0x1e0] sm:$0xff] %v640
      %719 = vst [vmem:[#allocation8 + $0x1e8] sm:$0xff] %v643
      %720 = vst [vmem:[#allocation8 + $0x1f0] sm:$0xff] %v648
      %721 = vst [vmem:[#allocation8 + $0x1f8] sm:$0xff] %v651
    $region25: #{tpu_custom_call.1} parent=1 // pred_fallthru
      _
    %p722 = scmp.gt.s32.totalorder 0, 0
    // Predicated region
    $region26: #{tpu_custom_call.1} parent=1 // pred_check
      %p723 = pneg %p722
    $region27: #{tpu_custom_call.1} parent=1 // pred_check_branch
      %725 = sbr.rel (%p723) target = $region29
    $region28: #{tpu_custom_call.1} parent=1 // pred_region
      %v726 = vld [vmem:[#allocation8] sm:$0xff]
      %v727 = vld [vmem:[#allocation8 + $0x8] sm:$0xff]
      %v728 = vld [vmem:[#allocation8 + $0x10] sm:$0xff]
      %v729 = vld [vmem:[#allocation8 + $0x18] sm:$0xff]
      %v730 = vld [vmem:[#allocation8 + $0x20] sm:$0xff]
      %v731 = vld [vmem:[#allocation8 + $0x28] sm:$0xff]
      %v732 = vld [vmem:[#allocation8 + $0x30] sm:$0xff]
      %v733 = vld [vmem:[#allocation8 + $0x38] sm:$0xff]
      %v734 = vld [vmem:[#allocation8 + $0x40] sm:$0xff]
      %v735 = vld [vmem:[#allocation8 + $0x48] sm:$0xff]
      %v736 = vld [vmem:[#allocation8 + $0x50] sm:$0xff]
      %v737 = vld [vmem:[#allocation8 + $0x58] sm:$0xff]
      %v738 = vld [vmem:[#allocation8 + $0x60] sm:$0xff]
      %v739 = vld [vmem:[#allocation8 + $0x68] sm:$0xff]
      %v740 = vld [vmem:[#allocation8 + $0x70] sm:$0xff]
      %v741 = vld [vmem:[#allocation8 + $0x78] sm:$0xff]
      %v742 = vld [vmem:[#allocation8 + $0x80] sm:$0xff]
      %v743 = vld [vmem:[#allocation8 + $0x88] sm:$0xff]
      %v744 = vld [vmem:[#allocation8 + $0x90] sm:$0xff]
      %v745 = vld [vmem:[#allocation8 + $0x98] sm:$0xff]
      %v746 = vld [vmem:[#allocation8 + $0xa0] sm:$0xff]
      %v747 = vld [vmem:[#allocation8 + $0xa8] sm:$0xff]
      %v748 = vld [vmem:[#allocation8 + $0xb0] sm:$0xff]
      %v749 = vld [vmem:[#allocation8 + $0xb8] sm:$0xff]
      %v750 = vld [vmem:[#allocation8 + $0xc0] sm:$0xff]
      %v751 = vld [vmem:[#allocation8 + $0xc8] sm:$0xff]
      %v752 = vld [vmem:[#allocation8 + $0xd0] sm:$0xff]
      %v753 = vld [vmem:[#allocation8 + $0xd8] sm:$0xff]
      %v754 = vld [vmem:[#allocation8 + $0xe0] sm:$0xff]
      %v755 = vld [vmem:[#allocation8 + $0xe8] sm:$0xff]
      %v756 = vld [vmem:[#allocation8 + $0xf0] sm:$0xff]
      %v757 = vld [vmem:[#allocation8 + $0xf8] sm:$0xff]
      %v758 = vld [vmem:[#allocation8 + $0x100] sm:$0xff]
      %v759 = vld [vmem:[#allocation8 + $0x108] sm:$0xff]
      %v760 = vld [vmem:[#allocation8 + $0x110] sm:$0xff]
      %v761 = vld [vmem:[#allocation8 + $0x118] sm:$0xff]
      %v762 = vld [vmem:[#allocation8 + $0x120] sm:$0xff]
      %v763 = vld [vmem:[#allocation8 + $0x128] sm:$0xff]
      %v764 = vld [vmem:[#allocation8 + $0x130] sm:$0xff]
      %v765 = vld [vmem:[#allocation8 + $0x138] sm:$0xff]
      %v766 = vld [vmem:[#allocation8 + $0x140] sm:$0xff]
      %v767 = vld [vmem:[#allocation8 + $0x148] sm:$0xff]
      %v768 = vld [vmem:[#allocation8 + $0x150] sm:$0xff]
      %v769 = vld [vmem:[#allocation8 + $0x158] sm:$0xff]
      %v770 = vld [vmem:[#allocation8 + $0x160] sm:$0xff]
      %v771 = vld [vmem:[#allocation8 + $0x168] sm:$0xff]
      %v772 = vld [vmem:[#allocation8 + $0x170] sm:$0xff]
      %v773 = vld [vmem:[#allocation8 + $0x178] sm:$0xff]
      %v774 = vld [vmem:[#allocation8 + $0x180] sm:$0xff]
      %v775 = vld [vmem:[#allocation8 + $0x188] sm:$0xff]
      %v776 = vld [vmem:[#allocation8 + $0x190] sm:$0xff]
      %v777 = vld [vmem:[#allocation8 + $0x198] sm:$0xff]
      %v778 = vld [vmem:[#allocation8 + $0x1a0] sm:$0xff]
      %v779 = vld [vmem:[#allocation8 + $0x1a8] sm:$0xff]
      %v780 = vld [vmem:[#allocation8 + $0x1b0] sm:$0xff]
      %v781 = vld [vmem:[#allocation8 + $0x1b8] sm:$0xff]
      %v782 = vld [vmem:[#allocation8 + $0x1c0] sm:$0xff]
      %v783 = vld [vmem:[#allocation8 + $0x1c8] sm:$0xff]
      %v784 = vld [vmem:[#allocation8 + $0x1d0] sm:$0xff]
      %v785 = vld [vmem:[#allocation8 + $0x1d8] sm:$0xff]
      %v786 = vld [vmem:[#allocation8 + $0x1e0] sm:$0xff]
      %v787 = vld [vmem:[#allocation8 + $0x1e8] sm:$0xff]
      %v788 = vld [vmem:[#allocation8 + $0x1f0] sm:$0xff]
      %v789 = vld [vmem:[#allocation8 + $0x1f8] sm:$0xff]
      %v790 = vadd.f32 %v726, %v400
      %v791 = vadd.f32 %v727, %v403
      %v792 = vadd.f32 %v728, %v408
      %v793 = vadd.f32 %v729, %v411
      %v794 = vadd.f32 %v730, %v416
      %v795 = vadd.f32 %v731, %v419
      %v796 = vadd.f32 %v732, %v424
      %v797 = vadd.f32 %v733, %v427
      %v798 = vadd.f32 %v734, %v432
      %v799 = vadd.f32 %v735, %v435
      %v800 = vadd.f32 %v736, %v440
      %v801 = vadd.f32 %v737, %v443
      %v802 = vadd.f32 %v738, %v448
      %v803 = vadd.f32 %v739, %v451
      %v804 = vadd.f32 %v740, %v456
      %v805 = vadd.f32 %v741, %v459
      %v806 = vadd.f32 %v742, %v464
      %v807 = vadd.f32 %v743, %v467
      %v808 = vadd.f32 %v744, %v472
      %v809 = vadd.f32 %v745, %v475
      %v810 = vadd.f32 %v746, %v480
      %v811 = vadd.f32 %v747, %v483
      %v812 = vadd.f32 %v748, %v488
      %v813 = vadd.f32 %v749, %v491
      %v814 = vadd.f32 %v750, %v496
      %v815 = vadd.f32 %v751, %v499
      %v816 = vadd.f32 %v752, %v504
      %v817 = vadd.f32 %v753, %v507
      %v818 = vadd.f32 %v754, %v512
      %v819 = vadd.f32 %v755, %v515
      %v820 = vadd.f32 %v756, %v520
      %v821 = vadd.f32 %v757, %v523
      %v822 = vadd.f32 %v758, %v528
      %v823 = vadd.f32 %v759, %v531
      %v824 = vadd.f32 %v760, %v536
      %v825 = vadd.f32 %v761, %v539
      %v826 = vadd.f32 %v762, %v544
      %v827 = vadd.f32 %v763, %v547
      %v828 = vadd.f32 %v764, %v552
      %v829 = vadd.f32 %v765, %v555
      %v830 = vadd.f32 %v766, %v560
      %v831 = vadd.f32 %v767, %v563
      %v832 = vadd.f32 %v768, %v568
      %v833 = vadd.f32 %v769, %v571
      %v834 = vadd.f32 %v770, %v576
      %v835 = vadd.f32 %v771, %v579
      %v836 = vadd.f32 %v772, %v584
      %v837 = vadd.f32 %v773, %v587
      %v838 = vadd.f32 %v774, %v592
      %v839 = vadd.f32 %v775, %v595
      %v840 = vadd.f32 %v776, %v600
      %v841 = vadd.f32 %v777, %v603
      %v842 = vadd.f32 %v778, %v608
      %v843 = vadd.f32 %v779, %v611
      %v844 = vadd.f32 %v780, %v616
      %v845 = vadd.f32 %v781, %v619
      %v846 = vadd.f32 %v782, %v624
      %v847 = vadd.f32 %v783, %v627
      %v848 = vadd.f32 %v784, %v632
      %v849 = vadd.f32 %v785, %v635
      %v850 = vadd.f32 %v786, %v640
      %v851 = vadd.f32 %v787, %v643
      %v852 = vadd.f32 %v788, %v648
      %v853 = vadd.f32 %v789, %v651
      %854 = vst [vmem:[#allocation8] sm:$0xff] %v790
      %855 = vst [vmem:[#allocation8 + $0x8] sm:$0xff] %v791
      %856 = vst [vmem:[#allocation8 + $0x10] sm:$0xff] %v792
      %857 = vst [vmem:[#allocation8 + $0x18] sm:$0xff] %v793
      %858 = vst [vmem:[#allocation8 + $0x20] sm:$0xff] %v794
      %859 = vst [vmem:[#allocation8 + $0x28] sm:$0xff] %v795
      %860 = vst [vmem:[#allocation8 + $0x30] sm:$0xff] %v796
      %861 = vst [vmem:[#allocation8 + $0x38] sm:$0xff] %v797
      %862 = vst [vmem:[#allocation8 + $0x40] sm:$0xff] %v798
      %863 = vst [vmem:[#allocation8 + $0x48] sm:$0xff] %v799
      %864 = vst [vmem:[#allocation8 + $0x50] sm:$0xff] %v800
      %865 = vst [vmem:[#allocation8 + $0x58] sm:$0xff] %v801
      %866 = vst [vmem:[#allocation8 + $0x60] sm:$0xff] %v802
      %867 = vst [vmem:[#allocation8 + $0x68] sm:$0xff] %v803
      %868 = vst [vmem:[#allocation8 + $0x70] sm:$0xff] %v804
      %869 = vst [vmem:[#allocation8 + $0x78] sm:$0xff] %v805
      %870 = vst [vmem:[#allocation8 + $0x80] sm:$0xff] %v806
      %871 = vst [vmem:[#allocation8 + $0x88] sm:$0xff] %v807
      %872 = vst [vmem:[#allocation8 + $0x90] sm:$0xff] %v808
      %873 = vst [vmem:[#allocation8 + $0x98] sm:$0xff] %v809
      %874 = vst [vmem:[#allocation8 + $0xa0] sm:$0xff] %v810
      %875 = vst [vmem:[#allocation8 + $0xa8] sm:$0xff] %v811
      %876 = vst [vmem:[#allocation8 + $0xb0] sm:$0xff] %v812
      %877 = vst [vmem:[#allocation8 + $0xb8] sm:$0xff] %v813
      %878 = vst [vmem:[#allocation8 + $0xc0] sm:$0xff] %v814
      %879 = vst [vmem:[#allocation8 + $0xc8] sm:$0xff] %v815
      %880 = vst [vmem:[#allocation8 + $0xd0] sm:$0xff] %v816
      %881 = vst [vmem:[#allocation8 + $0xd8] sm:$0xff] %v817
      %882 = vst [vmem:[#allocation8 + $0xe0] sm:$0xff] %v818
      %883 = vst [vmem:[#allocation8 + $0xe8] sm:$0xff] %v819
      %884 = vst [vmem:[#allocation8 + $0xf0] sm:$0xff] %v820
      %885 = vst [vmem:[#allocation8 + $0xf8] sm:$0xff] %v821
      %886 = vst [vmem:[#allocation8 + $0x100] sm:$0xff] %v822
      %887 = vst [vmem:[#allocation8 + $0x108] sm:$0xff] %v823
      %888 = vst [vmem:[#allocation8 + $0x110] sm:$0xff] %v824
      %889 = vst [vmem:[#allocation8 + $0x118] sm:$0xff] %v825
      %890 = vst [vmem:[#allocation8 + $0x120] sm:$0xff] %v826
      %891 = vst [vmem:[#allocation8 + $0x128] sm:$0xff] %v827
      %892 = vst [vmem:[#allocation8 + $0x130] sm:$0xff] %v828
      %893 = vst [vmem:[#allocation8 + $0x138] sm:$0xff] %v829
      %894 = vst [vmem:[#allocation8 + $0x140] sm:$0xff] %v830
      %895 = vst [vmem:[#allocation8 + $0x148] sm:$0xff] %v831
      %896 = vst [vmem:[#allocation8 + $0x150] sm:$0xff] %v832
      %897 = vst [vmem:[#allocation8 + $0x158] sm:$0xff] %v833
      %898 = vst [vmem:[#allocation8 + $0x160] sm:$0xff] %v834
      %899 = vst [vmem:[#allocation8 + $0x168] sm:$0xff] %v835
      %900 = vst [vmem:[#allocation8 + $0x170] sm:$0xff] %v836
      %901 = vst [vmem:[#allocation8 + $0x178] sm:$0xff] %v837
      %902 = vst [vmem:[#allocation8 + $0x180] sm:$0xff] %v838
      %903 = vst [vmem:[#allocation8 + $0x188] sm:$0xff] %v839
      %904 = vst [vmem:[#allocation8 + $0x190] sm:$0xff] %v840
      %905 = vst [vmem:[#allocation8 + $0x198] sm:$0xff] %v841
      %906 = vst [vmem:[#allocation8 + $0x1a0] sm:$0xff] %v842
      %907 = vst [vmem:[#allocation8 + $0x1a8] sm:$0xff] %v843
      %908 = vst [vmem:[#allocation8 + $0x1b0] sm:$0xff] %v844
      %909 = vst [vmem:[#allocation8 + $0x1b8] sm:$0xff] %v845
      %910 = vst [vmem:[#allocation8 + $0x1c0] sm:$0xff] %v846
      %911 = vst [vmem:[#allocation8 + $0x1c8] sm:$0xff] %v847
      %912 = vst [vmem:[#allocation8 + $0x1d0] sm:$0xff] %v848
      %913 = vst [vmem:[#allocation8 + $0x1d8] sm:$0xff] %v849
      %914 = vst [vmem:[#allocation8 + $0x1e0] sm:$0xff] %v850
      %915 = vst [vmem:[#allocation8 + $0x1e8] sm:$0xff] %v851
      %916 = vst [vmem:[#allocation8 + $0x1f0] sm:$0xff] %v852
      %917 = vst [vmem:[#allocation8 + $0x1f8] sm:$0xff] %v853
    $region29: #{tpu_custom_call.1} parent=1 // pred_fallthru
      _
    // Predicated region
    $region30: #{tpu_custom_call.1} parent=1 // pred_check
      %p918 = pneg %p654
    $region31: #{tpu_custom_call.1} parent=1 // pred_check_branch
      %920 = sbr.rel (%p918) target = $region33
    $region32: #{tpu_custom_call.1} parent=1 // pred_region
      %v921 = vld [vmem:[#allocation8] sm:$0xff]
      %v922 = vld [vmem:[#allocation8 + $0x8] sm:$0xff]
      %v923 = vld [vmem:[#allocation8 + $0x10] sm:$0xff]
      %v924 = vld [vmem:[#allocation8 + $0x18] sm:$0xff]
      %v925 = vld [vmem:[#allocation8 + $0x20] sm:$0xff]
      %v926 = vld [vmem:[#allocation8 + $0x28] sm:$0xff]
      %v927 = vld [vmem:[#allocation8 + $0x30] sm:$0xff]
      %v928 = vld [vmem:[#allocation8 + $0x38] sm:$0xff]
      %v929 = vld [vmem:[#allocation8 + $0x40] sm:$0xff]
      %v930 = vld [vmem:[#allocation8 + $0x48] sm:$0xff]
      %v931 = vld [vmem:[#allocation8 + $0x50] sm:$0xff]
      %v932 = vld [vmem:[#allocation8 + $0x58] sm:$0xff]
      %v933 = vld [vmem:[#allocation8 + $0x60] sm:$0xff]
      %v934 = vld [vmem:[#allocation8 + $0x68] sm:$0xff]
      %v935 = vld [vmem:[#allocation8 + $0x70] sm:$0xff]
      %v936 = vld [vmem:[#allocation8 + $0x78] sm:$0xff]
      %v937 = vld [vmem:[#allocation8 + $0x80] sm:$0xff]
      %v938 = vld [vmem:[#allocation8 + $0x88] sm:$0xff]
      %v939 = vld [vmem:[#allocation8 + $0x90] sm:$0xff]
      %v940 = vld [vmem:[#allocation8 + $0x98] sm:$0xff]
      %v941 = vld [vmem:[#allocation8 + $0xa0] sm:$0xff]
      %v942 = vld [vmem:[#allocation8 + $0xa8] sm:$0xff]
      %v943 = vld [vmem:[#allocation8 + $0xb0] sm:$0xff]
      %v944 = vld [vmem:[#allocation8 + $0xb8] sm:$0xff]
      %v945 = vld [vmem:[#allocation8 + $0xc0] sm:$0xff]
      %v946 = vld [vmem:[#allocation8 + $0xc8] sm:$0xff]
      %v947 = vld [vmem:[#allocation8 + $0xd0] sm:$0xff]
      %v948 = vld [vmem:[#allocation8 + $0xd8] sm:$0xff]
      %v949 = vld [vmem:[#allocation8 + $0xe0] sm:$0xff]
      %v950 = vld [vmem:[#allocation8 + $0xe8] sm:$0xff]
      %v951 = vld [vmem:[#allocation8 + $0xf0] sm:$0xff]
      %v952 = vld [vmem:[#allocation8 + $0xf8] sm:$0xff]
      %v953 = vld [vmem:[#allocation8 + $0x100] sm:$0xff]
      %v954 = vld [vmem:[#allocation8 + $0x108] sm:$0xff]
      %v955 = vld [vmem:[#allocation8 + $0x110] sm:$0xff]
      %v956 = vld [vmem:[#allocation8 + $0x118] sm:$0xff]
      %v957 = vld [vmem:[#allocation8 + $0x120] sm:$0xff]
      %v958 = vld [vmem:[#allocation8 + $0x128] sm:$0xff]
      %v959 = vld [vmem:[#allocation8 + $0x130] sm:$0xff]
      %v960 = vld [vmem:[#allocation8 + $0x138] sm:$0xff]
      %v961 = vld [vmem:[#allocation8 + $0x140] sm:$0xff]
      %v962 = vld [vmem:[#allocation8 + $0x148] sm:$0xff]
      %v963 = vld [vmem:[#allocation8 + $0x150] sm:$0xff]
      %v964 = vld [vmem:[#allocation8 + $0x158] sm:$0xff]
      %v965 = vld [vmem:[#allocation8 + $0x160] sm:$0xff]
      %v966 = vld [vmem:[#allocation8 + $0x168] sm:$0xff]
      %v967 = vld [vmem:[#allocation8 + $0x170] sm:$0xff]
      %v968 = vld [vmem:[#allocation8 + $0x178] sm:$0xff]
      %v969 = vld [vmem:[#allocation8 + $0x180] sm:$0xff]
      %v970 = vld [vmem:[#allocation8 + $0x188] sm:$0xff]
      %v971 = vld [vmem:[#allocation8 + $0x190] sm:$0xff]
      %v972 = vld [vmem:[#allocation8 + $0x198] sm:$0xff]
      %v973 = vld [vmem:[#allocation8 + $0x1a0] sm:$0xff]
      %v974 = vld [vmem:[#allocation8 + $0x1a8] sm:$0xff]
      %v975 = vld [vmem:[#allocation8 + $0x1b0] sm:$0xff]
      %v976 = vld [vmem:[#allocation8 + $0x1b8] sm:$0xff]
      %v977 = vld [vmem:[#allocation8 + $0x1c0] sm:$0xff]
      %v978 = vld [vmem:[#allocation8 + $0x1c8] sm:$0xff]
      %v979 = vld [vmem:[#allocation8 + $0x1d0] sm:$0xff]
      %v980 = vld [vmem:[#allocation8 + $0x1d8] sm:$0xff]
      %v981 = vld [vmem:[#allocation8 + $0x1e0] sm:$0xff]
      %v982 = vld [vmem:[#allocation8 + $0x1e8] sm:$0xff]
      %v983 = vld [vmem:[#allocation8 + $0x1f0] sm:$0xff]
      %v984 = vld [vmem:[#allocation8 + $0x1f8] sm:$0xff]
      %s985 = sld [smem:[#allocation2]]
      %v986 = vstv %s985
      %v987 = vmul.f32 %v921, %v986
      %v988 = vmul.f32 %v922, %v986
      %v989 = vmul.f32 %v923, %v986
      %v990 = vmul.f32 %v924, %v986
      %v991 = vmul.f32 %v925, %v986
      %v992 = vmul.f32 %v926, %v986
      %v993 = vmul.f32 %v927, %v986
      %v994 = vmul.f32 %v928, %v986
      %v995 = vmul.f32 %v929, %v986
      %v996 = vmul.f32 %v930, %v986
      %v997 = vmul.f32 %v931, %v986
      %v998 = vmul.f32 %v932, %v986
      %v999 = vmul.f32 %v933, %v986
      %v1000 = vmul.f32 %v934, %v986
      %v1001 = vmul.f32 %v935, %v986
      %v1002 = vmul.f32 %v936, %v986
      %v1003 = vmul.f32 %v937, %v986
      %v1004 = vmul.f32 %v938, %v986
      %v1005 = vmul.f32 %v939, %v986
      %v1006 = vmul.f32 %v940, %v986
      %v1007 = vmul.f32 %v941, %v986
      %v1008 = vmul.f32 %v942, %v986
      %v1009 = vmul.f32 %v943, %v986
      %v1010 = vmul.f32 %v944, %v986
      %v1011 = vmul.f32 %v945, %v986
      %v1012 = vmul.f32 %v946, %v986
      %v1013 = vmul.f32 %v947, %v986
      %v1014 = vmul.f32 %v948, %v986
      %v1015 = vmul.f32 %v949, %v986
      %v1016 = vmul.f32 %v950, %v986
      %v1017 = vmul.f32 %v951, %v986
      %v1018 = vmul.f32 %v952, %v986
      %v1019 = vmul.f32 %v953, %v986
      %v1020 = vmul.f32 %v954, %v986
      %v1021 = vmul.f32 %v955, %v986
      %v1022 = vmul.f32 %v956, %v986
      %v1023 = vmul.f32 %v957, %v986
      %v1024 = vmul.f32 %v958, %v986
      %v1025 = vmul.f32 %v959, %v986
      %v1026 = vmul.f32 %v960, %v986
      %v1027 = vmul.f32 %v961, %v986
      %v1028 = vmul.f32 %v962, %v986
      %v1029 = vmul.f32 %v963, %v986
      %v1030 = vmul.f32 %v964, %v986
      %v1031 = vmul.f32 %v965, %v986
      %v1032 = vmul.f32 %v966, %v986
      %v1033 = vmul.f32 %v967, %v986
      %v1034 = vmul.f32 %v968, %v986
      %v1035 = vmul.f32 %v969, %v986
      %v1036 = vmul.f32 %v970, %v986
      %v1037 = vmul.f32 %v971, %v986
      %v1038 = vmul.f32 %v972, %v986
      %v1039 = vmul.f32 %v973, %v986
      %v1040 = vmul.f32 %v974, %v986
      %v1041 = vmul.f32 %v975, %v986
      %v1042 = vmul.f32 %v976, %v986
      %v1043 = vmul.f32 %v977, %v986
      %v1044 = vmul.f32 %v978, %v986
      %v1045 = vmul.f32 %v979, %v986
      %v1046 = vmul.f32 %v980, %v986
      %v1047 = vmul.f32 %v981, %v986
      %v1048 = vmul.f32 %v982, %v986
      %v1049 = vmul.f32 %v983, %v986
      %v1050 = vmul.f32 %v984, %v986
      %1051 = vst [vmem:[#allocation8] sm:$0xff] %v987
      %1052 = vst [vmem:[#allocation8 + $0x8] sm:$0xff] %v988
      %1053 = vst [vmem:[#allocation8 + $0x10] sm:$0xff] %v989
      %1054 = vst [vmem:[#allocation8 + $0x18] sm:$0xff] %v990
      %1055 = vst [vmem:[#allocation8 + $0x20] sm:$0xff] %v991
      %1056 = vst [vmem:[#allocation8 + $0x28] sm:$0xff] %v992
      %1057 = vst [vmem:[#allocation8 + $0x30] sm:$0xff] %v993
      %1058 = vst [vmem:[#allocation8 + $0x38] sm:$0xff] %v994
      %1059 = vst [vmem:[#allocation8 + $0x40] sm:$0xff] %v995
      %1060 = vst [vmem:[#allocation8 + $0x48] sm:$0xff] %v996
      %1061 = vst [vmem:[#allocation8 + $0x50] sm:$0xff] %v997
      %1062 = vst [vmem:[#allocation8 + $0x58] sm:$0xff] %v998
      %1063 = vst [vmem:[#allocation8 + $0x60] sm:$0xff] %v999
      %1064 = vst [vmem:[#allocation8 + $0x68] sm:$0xff] %v1000
      %1065 = vst [vmem:[#allocation8 + $0x70] sm:$0xff] %v1001
      %1066 = vst [vmem:[#allocation8 + $0x78] sm:$0xff] %v1002
      %1067 = vst [vmem:[#allocation8 + $0x80] sm:$0xff] %v1003
      %1068 = vst [vmem:[#allocation8 + $0x88] sm:$0xff] %v1004
      %1069 = vst [vmem:[#allocation8 + $0x90] sm:$0xff] %v1005
      %1070 = vst [vmem:[#allocation8 + $0x98] sm:$0xff] %v1006
      %1071 = vst [vmem:[#allocation8 + $0xa0] sm:$0xff] %v1007
      %1072 = vst [vmem:[#allocation8 + $0xa8] sm:$0xff] %v1008
      %1073 = vst [vmem:[#allocation8 + $0xb0] sm:$0xff] %v1009
      %1074 = vst [vmem:[#allocation8 + $0xb8] sm:$0xff] %v1010
      %1075 = vst [vmem:[#allocation8 + $0xc0] sm:$0xff] %v1011
      %1076 = vst [vmem:[#allocation8 + $0xc8] sm:$0xff] %v1012
      %1077 = vst [vmem:[#allocation8 + $0xd0] sm:$0xff] %v1013
      %1078 = vst [vmem:[#allocation8 + $0xd8] sm:$0xff] %v1014
      %1079 = vst [vmem:[#allocation8 + $0xe0] sm:$0xff] %v1015
      %1080 = vst [vmem:[#allocation8 + $0xe8] sm:$0xff] %v1016
      %1081 = vst [vmem:[#allocation8 + $0xf0] sm:$0xff] %v1017
      %1082 = vst [vmem:[#allocation8 + $0xf8] sm:$0xff] %v1018
      %1083 = vst [vmem:[#allocation8 + $0x100] sm:$0xff] %v1019
      %1084 = vst [vmem:[#allocation8 + $0x108] sm:$0xff] %v1020
      %1085 = vst [vmem:[#allocation8 + $0x110] sm:$0xff] %v1021
      %1086 = vst [vmem:[#allocation8 + $0x118] sm:$0xff] %v1022
      %1087 = vst [vmem:[#allocation8 + $0x120] sm:$0xff] %v1023
      %1088 = vst [vmem:[#allocation8 + $0x128] sm:$0xff] %v1024
      %1089 = vst [vmem:[#allocation8 + $0x130] sm:$0xff] %v1025
      %1090 = vst [vmem:[#allocation8 + $0x138] sm:$0xff] %v1026
      %1091 = vst [vmem:[#allocation8 + $0x140] sm:$0xff] %v1027
      %1092 = vst [vmem:[#allocation8 + $0x148] sm:$0xff] %v1028
      %1093 = vst [vmem:[#allocation8 + $0x150] sm:$0xff] %v1029
      %1094 = vst [vmem:[#allocation8 + $0x158] sm:$0xff] %v1030
      %1095 = vst [vmem:[#allocation8 + $0x160] sm:$0xff] %v1031
      %1096 = vst [vmem:[#allocation8 + $0x168] sm:$0xff] %v1032
      %1097 = vst [vmem:[#allocation8 + $0x170] sm:$0xff] %v1033
      %1098 = vst [vmem:[#allocation8 + $0x178] sm:$0xff] %v1034
      %1099 = vst [vmem:[#allocation8 + $0x180] sm:$0xff] %v1035
      %1100 = vst [vmem:[#allocation8 + $0x188] sm:$0xff] %v1036
      %1101 = vst [vmem:[#allocation8 + $0x190] sm:$0xff] %v1037
      %1102 = vst [vmem:[#allocation8 + $0x198] sm:$0xff] %v1038
      %1103 = vst [vmem:[#allocation8 + $0x1a0] sm:$0xff] %v1039
      %1104 = vst [vmem:[#allocation8 + $0x1a8] sm:$0xff] %v1040
      %1105 = vst [vmem:[#allocation8 + $0x1b0] sm:$0xff] %v1041
      %1106 = vst [vmem:[#allocation8 + $0x1b8] sm:$0xff] %v1042
      %1107 = vst [vmem:[#allocation8 + $0x1c0] sm:$0xff] %v1043
      %1108 = vst [vmem:[#allocation8 + $0x1c8] sm:$0xff] %v1044
      %1109 = vst [vmem:[#allocation8 + $0x1d0] sm:$0xff] %v1045
      %1110 = vst [vmem:[#allocation8 + $0x1d8] sm:$0xff] %v1046
      %1111 = vst [vmem:[#allocation8 + $0x1e0] sm:$0xff] %v1047
      %1112 = vst [vmem:[#allocation8 + $0x1e8] sm:$0xff] %v1048
      %1113 = vst [vmem:[#allocation8 + $0x1f0] sm:$0xff] %v1049
      %1114 = vst [vmem:[#allocation8 + $0x1f8] sm:$0xff] %v1050
    $region33: #{tpu_custom_call.1} parent=1 // pred_fallthru
      _
    // Predicated region
    $region34: #{tpu_custom_call.1} parent=1 // pred_check
      _
    $region35: #{tpu_custom_call.1} parent=1 // pred_check_branch
      %1116 = sbr.rel (0) target = $region37
    $region36: #{tpu_custom_call.1} parent=1 // pred_region
      %s1118 = ssub.s32 8192, 8192
      %1119 = vsyncadd [#allocation5], %s1118
      %s1120 = sshll.u32 [#allocation8], 4
      %s1121 = int_to_ptr.vmem [resolvable:$true] %s1120
      %1126 = dma.vmem_to_hbm [thread:$0]  %s1121, 8192, %s3, [#allocation5], 128, 128, 8
    $region37: #{tpu_custom_call.1} parent=1 // pred_fallthru
      _
    // Predicated region
    $region38: #{tpu_custom_call.1} parent=1 // pred_check
      _
    $region39: #{tpu_custom_call.1} parent=1 // pred_check_branch
      %1128 = sbr.rel (0) target = $region41
    $region40: #{tpu_custom_call.1} parent=1 // pred_region
      %1129 = dma.done [#allocation5], 8192
    $region41: #{tpu_custom_call.1} parent=1 // pred_fallthru
      _
    %1130 = vsyncpa [#allocation4], 1
    %1131 = vsyncpa [#allocation7], 1
    %1132 = vsyncpa [#allocation5], 1

</llo_original>
